<compile_context>
chip_gen: v7x
topology: tpu7x:2x2x1
jax: 0.10.0
libtpu: 0.0.40
codegen_flags: <defaults>
</compile_context>

<pallas_src>
import functools

import jax
import jax.numpy as jnp
from jax.experimental import pallas as pl
from jax.experimental.pallas import tpu as pltpu

SELU_ALPHA = 1.6732632423543772848170429916717
SELU_SCALE = 1.0507009873554804934193349852946
BN_EPS = 1e-5


def _round_up(x, m):
    return ((x + m - 1) // m) * m


def limb_injector_kernel(feat_ref, heat_ref, wf_ref, wh_ref, gamma_ref, beta_ref,
                         out_ref, sum_ref, sumsq_ref, scale_ref, shift_ref,
                         *, n_heat, n_valid, eps):
    """Two-phase grid kernel: grid = (2, num_lane_tiles).

    phase 0: compute the 1x1-conv tile, accumulate per-channel sum / sum-of-squares
             (training-mode BatchNorm batch statistics) in VMEM scratch.
    phase 1: recompute the conv tile (cheaper than storing + reloading it), apply
             BN (batch stats) + SELU and store the output tile exactly once.

    feat_ref : (C_f, T) f32      heat_ref : (C_h, T) f32   (T = lane tile of B*H*W)
    wf_ref   : (C_h, C_out, C_f) f32  -- per-heat-channel conv-weight blocks
    wh_ref   : (C_out, C_h) f32       -- conv-weight block applied to heat itself
    gamma/beta : (C_out, 1) f32
    out_ref  : (C_out, T) f32
    """
    phase = pl.program_id(0)
    tile = pl.program_id(1)
    last_tile = pl.num_programs(1) - 1
    C_h = n_heat

    feat = feat_ref[...]
    heat = heat_ref[...]

    # 1x1 conv over concat([feat*heat_0, ..., feat*heat_{C_h-1}, heat]) WITHOUT
    # materializing the sublane-misaligned concatenated tensor: accumulate one small
    # matmul per pre-split weight block. (The conv bias is intentionally omitted; it
    # is cancelled exactly by the BN mean subtraction below.)
    conv = jnp.dot(wh_ref[...], heat, preferred_element_type=jnp.float32)
    for i in range(C_h):                              # C_h is a small static constant
        conv = conv + jnp.dot(wf_ref[i], feat * heat[i:i + 1, :],
                              preferred_element_type=jnp.float32)

    # ---- phase 0: BatchNorm batch statistics ---------------------------------
    @pl.when(jnp.logical_and(phase == 0, tile == 0))
    def _init():
        sum_ref[...] = jnp.zeros_like(sum_ref)
        sumsq_ref[...] = jnp.zeros_like(sumsq_ref)

    @pl.when(phase == 0)
    def _accumulate():
        sum_ref[...] += jnp.sum(conv, axis=1, keepdims=True)
        sumsq_ref[...] += jnp.sum(conv * conv, axis=1, keepdims=True)

    @pl.when(jnp.logical_and(phase == 0, tile == last_tile))
    def _finalize_stats():
        mean = sum_ref[...] * (1.0 / n_valid)
        var = sumsq_ref[...] * (1.0 / n_valid) - mean * mean     # biased variance
        inv_std = jax.lax.rsqrt(var + eps)
        scale = gamma_ref[...] * inv_std
        scale_ref[...] = scale
        shift_ref[...] = beta_ref[...] - mean * scale

    # ---- phase 1: BN + SELU, single lane-dense output store ------------------
    @pl.when(phase == 1)
    def _write():
        x = conv * scale_ref[...] + shift_ref[...]
        out_ref[...] = SELU_SCALE * jnp.where(x > 0, x,
                                              SELU_ALPHA * (jnp.exp(x) - 1.0))


def limb_injector_forward(feature, heat, w, bias, gamma, beta, *, lane_tile=512):
    """feature: (B, C_f, H, W), heat: (B, C_h, H, W), w: (C_out, C_h*C_f + C_h).

    `bias` (the 1x1-conv bias) is accepted for API parity with the PyTorch module but
    is mathematically cancelled by training-mode BatchNorm, so it is not used.
    The dead `heat_2 = softmax(...)` of the reference forward is never consumed and
    is intentionally skipped.
    """
    del bias
    B, C_f, H, W = feature.shape
    _, C_h, _, _ = heat.shape
    C_out, C_in = w.shape
    assert C_in == C_h * C_f + C_h
    HW = H * W
    N = B * HW

    # NCHW -> (C, B*HW): fold batch onto the lane axis so the kernel does lane-dense
    # matmuls and a single lane-dense output store (wrapper-side layout plumbing).
    feat2 = jnp.transpose(feature.reshape(B, C_f, HW).astype(jnp.float32),
                          (1, 0, 2)).reshape(C_f, N)
    heat2 = jnp.transpose(heat.reshape(B, C_h, HW).astype(jnp.float32),
                          (1, 0, 2)).reshape(C_h, N)

    # Lane tiling (>=128-wide). Zero-padding the lane dim is exact: padded columns
    # yield conv == 0 (no bias), so they contribute nothing to the BN sums; the true
    # element count N is passed separately as n_valid.
    lane_tile = _round_up(max(int(lane_tile), 128), 128)
    tile = min(lane_tile, _round_up(N, 128))
    n_pad = _round_up(N, tile)
    num_tiles = n_pad // tile
    if n_pad != N:
        feat2 = jnp.pad(feat2, ((0, 0), (0, n_pad - N)))
        heat2 = jnp.pad(heat2, ((0, 0), (0, n_pad - N)))

    # Pre-split the 1x1-conv weight into per-heat-channel blocks (no in-kernel concat).
    w = w.astype(jnp.float32)
    w_feat = w[:, :C_h * C_f].reshape(C_out, C_h, C_f).transpose(1, 0, 2)  # (C_h, C_out, C_f)
    w_heat = w[:, C_h * C_f:]                                              # (C_out, C_h)

    kernel = functools.partial(limb_injector_kernel, n_heat=C_h,
                               n_valid=float(N), eps=BN_EPS)
    out = pl.pallas_call(
        kernel,
        out_shape=jax.ShapeDtypeStruct((C_out, n_pad), jnp.float32),
        grid_spec=pltpu.PrefetchScalarGridSpec(
            num_scalar_prefetch=0,
            grid=(2, num_tiles),                       # (phase, lane tile)
            in_specs=[
                pl.BlockSpec((C_f, tile), lambda p, t: (0, t)),
                pl.BlockSpec((C_h, tile), lambda p, t: (0, t)),
                pl.BlockSpec((C_h, C_out, C_f), lambda p, t: (0, 0, 0)),
                pl.BlockSpec((C_out, C_h), lambda p, t: (0, 0)),
                pl.BlockSpec((C_out, 1), lambda p, t: (0, 0)),
                pl.BlockSpec((C_out, 1), lambda p, t: (0, 0)),
            ],
            # Output tiles are only produced during phase 1; during phase 0 the index
            # map pins block 0, which phase 1 then writes before it is ever flushed.
            out_specs=pl.BlockSpec((C_out, tile), lambda p, t: (0, t * p)),
            scratch_shapes=[pltpu.VMEM((C_out, 1), jnp.float32)] * 4,
        ),
        compiler_params=pltpu.CompilerParams(
            dimension_semantics=("arbitrary", "arbitrary"),
            vmem_limit_bytes=32 * 1024 * 1024,
        ),
    )(feat2, heat2, w_feat, w_heat,
      gamma.reshape(C_out, 1).astype(jnp.float32),
      beta.reshape(C_out, 1).astype(jnp.float32))

    out = out[:, :N].reshape(C_out, B, HW)
    return jnp.transpose(out, (1, 0, 2)).reshape(B, C_out, H, W)


def _reference_forward(feature, heat, w, bias, gamma, beta):
    """Pure-JAX reference mirroring the PyTorch module (with bias, full math)."""
    C_h = heat.shape[1]
    parts = [feature * heat[:, i:i + 1] for i in range(C_h)]
    x = jnp.concatenate(parts + [heat], axis=1)                       # (B, C_in, H, W)
    y = jnp.einsum('oc,bchw->bohw', w, x,
                   precision=jax.lax.Precision.HIGHEST) + bias[None, :, None, None]
    mean = jnp.mean(y, axis=(0, 2, 3), keepdims=True)
    var = jnp.mean((y - mean) ** 2, axis=(0, 2, 3), keepdims=True)    # biased variance
    yn = (y - mean) * jax.lax.rsqrt(var + BN_EPS)
    yn = yn * gamma[None, :, None, None] + beta[None, :, None, None]
    return SELU_SCALE * jnp.where(yn > 0, yn, SELU_ALPHA * (jnp.exp(yn) - 1.0))


if __name__ == "__main__":
    key = jax.random.PRNGKey(0)
    B, C_f, C_h, H, W = 2, 4, 3, 16, 16
    C_in = C_h * (C_f + 1)          # channels seen by the 1x1 conv = C_h*C_f + C_h
    C_out = 8

    k1, k2, k3, k4 = jax.random.split(key, 4)
    feature = jax.random.normal(k1, (B, C_f, H, W), dtype=jnp.float32)
    heat = jax.random.normal(k2, (B, C_h, H, W), dtype=jnp.float32)

    # Deterministic synthetic parameters (Conv2d 1x1 weight squeezed to (C_out, C_in)).
    w = 0.1 * jax.random.normal(k3, (C_out, C_in), dtype=jnp.float32)
    bias = 0.1 * jax.random.normal(k4, (C_out,), dtype=jnp.float32)
    gamma = jnp.ones((C_out,), dtype=jnp.float32)    # BatchNorm2d default init
    beta = jnp.zeros((C_out,), dtype=jnp.float32)

    out = limb_injector_forward(feature, heat, w, bias, gamma, beta)
    out = jax.block_until_ready(out)
    assert out.shape == (B, C_out, H, W) and out.dtype == jnp.float32

    ref = jax.block_until_ready(_reference_forward(feature, heat, w, bias, gamma, beta))
    max_err = float(jnp.max(jnp.abs(out - ref)))
    assert max_err < 5e-3, f"mismatch vs reference: max abs err = {max_err}"
    print("KERNEL_OK")
</pallas_src>

<mosaic_0001>
module attributes {stable_mosaic.version = 11 : i64} {
  func.func @limb_injector_kernel(%arg0: i32, %arg1: i32, %arg2: memref<4x512xf32, #tpu.memory_space<vmem>>, %arg3: memref<3x512xf32, #tpu.memory_space<vmem>>, %arg4: memref<3x8x4xf32, #tpu.memory_space<vmem>>, %arg5: memref<8x3xf32, #tpu.memory_space<vmem>>, %arg6: memref<8x1xf32, #tpu.memory_space<vmem>>, %arg7: memref<8x1xf32, #tpu.memory_space<vmem>>, %arg8: memref<8x512xf32, #tpu.memory_space<vmem>>, %arg9: memref<8x1xf32, #tpu.memory_space<vmem>>, %arg10: memref<8x1xf32, #tpu.memory_space<vmem>>, %arg11: memref<8x1xf32, #tpu.memory_space<vmem>>, %arg12: memref<8x1xf32, #tpu.memory_space<vmem>>) attributes {dimension_semantics = [#tpu.dimension_semantics<arbitrary>, #tpu.dimension_semantics<arbitrary>], iteration_bounds = array<i64: 2, 1>, scalar_prefetch = 0 : i64, scratch_operands = 4 : i64, tpu.core_type = #tpu.core_type<tc>, window_params = [{transform_indices = @transform_0, window_bounds = array<i64: 4, 512>}, {transform_indices = @transform_1, window_bounds = array<i64: 3, 512>}, {pipeline_mode = #tpu.pipeline_mode<synchronous>, transform_indices = @transform_2, window_bounds = array<i64: 3, 8, 4>}, {pipeline_mode = #tpu.pipeline_mode<synchronous>, transform_indices = @transform_3, window_bounds = array<i64: 8, 3>}, {pipeline_mode = #tpu.pipeline_mode<synchronous>, transform_indices = @transform_4, window_bounds = array<i64: 8, 1>}, {pipeline_mode = #tpu.pipeline_mode<synchronous>, transform_indices = @transform_5, window_bounds = array<i64: 8, 1>}, {transform_indices = @transform_6, window_bounds = array<i64: 8, 512>}]} {
    %c0 = arith.constant 0 : index
    %c0_0 = arith.constant 0 : index
    %0 = vector.load %arg2[%c0, %c0_0] : memref<4x512xf32, #tpu.memory_space<vmem>>, vector<4x512xf32>
    %c0_1 = arith.constant 0 : index
    %c0_2 = arith.constant 0 : index
    %1 = vector.load %arg3[%c0_1, %c0_2] : memref<3x512xf32, #tpu.memory_space<vmem>>, vector<3x512xf32>
    %c0_3 = arith.constant 0 : index
    %c0_4 = arith.constant 0 : index
    %2 = vector.load %arg5[%c0_3, %c0_4] : memref<8x3xf32, #tpu.memory_space<vmem>>, vector<8x3xf32>
    %cst = arith.constant dense<0.000000e+00> : vector<8x512xf32>
    %3 = tpu.matmul %2, %1, %cst {dimension_numbers = #tpu.dot_dimension_numbers<[1], [0], [0], [1], [0, 0, 1, 1], [], []>} : vector<8x3xf32>, vector<3x512xf32>, vector<8x512xf32> -> vector<8x512xf32>
    %c0_5 = arith.constant 0 : index
    %c0_6 = arith.constant 0 : index
    %c0_7 = arith.constant 0 : index
    %4 = vector.load %arg4[%c0_5, %c0_6, %c0_7] : memref<3x8x4xf32, #tpu.memory_space<vmem>>, vector<1x8x4xf32>
    %5 = vector.shape_cast %4 : vector<1x8x4xf32> to vector<8x4xf32>
    %6 = vector.extract_strided_slice %1 {offsets = [0, 0], sizes = [1, 512], strides = [1, 1]} : vector<3x512xf32> to vector<1x512xf32>
    %7 = vector.broadcast %6 : vector<1x512xf32> to vector<4x512xf32>
    %8 = arith.mulf %0, %7 : vector<4x512xf32>
    %cst_8 = arith.constant dense<0.000000e+00> : vector<8x512xf32>
    %9 = tpu.matmul %5, %8, %cst_8 {dimension_numbers = #tpu.dot_dimension_numbers<[1], [0], [0], [1], [0, 0, 1, 1], [], []>} : vector<8x4xf32>, vector<4x512xf32>, vector<8x512xf32> -> vector<8x512xf32>
    %10 = arith.addf %3, %9 : vector<8x512xf32>
    %c1 = arith.constant 1 : index
    %c0_9 = arith.constant 0 : index
    %c0_10 = arith.constant 0 : index
    %11 = vector.load %arg4[%c1, %c0_9, %c0_10] : memref<3x8x4xf32, #tpu.memory_space<vmem>>, vector<1x8x4xf32>
    %12 = vector.shape_cast %11 : vector<1x8x4xf32> to vector<8x4xf32>
    %13 = vector.extract_strided_slice %1 {offsets = [1, 0], sizes = [1, 512], strides = [1, 1]} : vector<3x512xf32> to vector<1x512xf32>
    %14 = vector.broadcast %13 : vector<1x512xf32> to vector<4x512xf32>
    %15 = arith.mulf %0, %14 : vector<4x512xf32>
    %cst_11 = arith.constant dense<0.000000e+00> : vector<8x512xf32>
    %16 = tpu.matmul %12, %15, %cst_11 {dimension_numbers = #tpu.dot_dimension_numbers<[1], [0], [0], [1], [0, 0, 1, 1], [], []>} : vector<8x4xf32>, vector<4x512xf32>, vector<8x512xf32> -> vector<8x512xf32>
    %17 = arith.addf %10, %16 : vector<8x512xf32>
    %c2 = arith.constant 2 : index
    %c0_12 = arith.constant 0 : index
    %c0_13 = arith.constant 0 : index
    %18 = vector.load %arg4[%c2, %c0_12, %c0_13] : memref<3x8x4xf32, #tpu.memory_space<vmem>>, vector<1x8x4xf32>
    %19 = vector.shape_cast %18 : vector<1x8x4xf32> to vector<8x4xf32>
    %20 = vector.extract_strided_slice %1 {offsets = [2, 0], sizes = [1, 512], strides = [1, 1]} : vector<3x512xf32> to vector<1x512xf32>
    %21 = vector.broadcast %20 : vector<1x512xf32> to vector<4x512xf32>
    %22 = arith.mulf %0, %21 : vector<4x512xf32>
    %cst_14 = arith.constant dense<0.000000e+00> : vector<8x512xf32>
    %23 = tpu.matmul %19, %22, %cst_14 {dimension_numbers = #tpu.dot_dimension_numbers<[1], [0], [0], [1], [0, 0, 1, 1], [], []>} : vector<8x4xf32>, vector<4x512xf32>, vector<8x512xf32> -> vector<8x512xf32>
    %24 = arith.addf %17, %23 : vector<8x512xf32>
    %c0_i32 = arith.constant 0 : i32
    %25 = arith.cmpi eq, %arg0, %c0_i32 : i32
    %c0_i32_15 = arith.constant 0 : i32
    %26 = arith.cmpi eq, %arg1, %c0_i32_15 : i32
    %27 = arith.andi %25, %26 : i1
    %28 = arith.extui %27 : i1 to i32
    %c0_i32_16 = arith.constant 0 : i32
    %29 = arith.cmpi ne, %28, %c0_i32_16 : i32
    scf.if %29 {
      %cst_23 = arith.constant 0.000000e+00 : f32
      %41 = vector.broadcast %cst_23 : f32 to vector<8x1xf32>
      %c0_24 = arith.constant 0 : index
      %c0_25 = arith.constant 0 : index
      %42 = vector.load %arg9[%c0_24, %c0_25] : memref<8x1xf32, #tpu.memory_space<vmem>>, vector<8x1xf32>
      tpu.vector_store %arg9[%c0_24, %c0_25], %41 {strides = array<i32>} : memref<8x1xf32, #tpu.memory_space<vmem>>, vector<8x1xf32>,
      %cst_26 = arith.constant 0.000000e+00 : f32
      %43 = vector.broadcast %cst_26 : f32 to vector<8x1xf32>
      %c0_27 = arith.constant 0 : index
      %c0_28 = arith.constant 0 : index
      %44 = vector.load %arg10[%c0_27, %c0_28] : memref<8x1xf32, #tpu.memory_space<vmem>>, vector<8x1xf32>
      tpu.vector_store %arg10[%c0_27, %c0_28], %43 {strides = array<i32>} : memref<8x1xf32, #tpu.memory_space<vmem>>, vector<8x1xf32>,
    } else {
    }
    %c0_i32_17 = arith.constant 0 : i32
    %30 = arith.cmpi eq, %arg0, %c0_i32_17 : i32
    %31 = arith.extui %30 : i1 to i32
    %c0_i32_18 = arith.constant 0 : i32
    %32 = arith.cmpi ne, %31, %c0_i32_18 : i32
    scf.if %32 {
      %c0_23 = arith.constant 0 : index
      %c0_24 = arith.constant 0 : index
      %41 = vector.load %arg9[%c0_23, %c0_24] : memref<8x1xf32, #tpu.memory_space<vmem>>, vector<8x1xf32>
      %cst_25 = arith.constant dense<0.000000e+00> : vector<8xf32>
      %42 = vector.multi_reduction <add>, %24, %cst_25 [1] : vector<8x512xf32> to vector<8xf32>
      %43 = vector.shape_cast %42 : vector<8xf32> to vector<8x1xf32>
      %44 = arith.addf %41, %43 : vector<8x1xf32>
      %c0_26 = arith.constant 0 : index
      %c0_27 = arith.constant 0 : index
      %45 = vector.load %arg9[%c0_26, %c0_27] : memref<8x1xf32, #tpu.memory_space<vmem>>, vector<8x1xf32>
      tpu.vector_store %arg9[%c0_26, %c0_27], %44 {strides = array<i32>} : memref<8x1xf32, #tpu.memory_space<vmem>>, vector<8x1xf32>,
      %c0_28 = arith.constant 0 : index
      %c0_29 = arith.constant 0 : index
      %46 = vector.load %arg10[%c0_28, %c0_29] : memref<8x1xf32, #tpu.memory_space<vmem>>, vector<8x1xf32>
      %47 = arith.mulf %24, %24 : vector<8x512xf32>
      %cst_30 = arith.constant dense<0.000000e+00> : vector<8xf32>
      %48 = vector.multi_reduction <add>, %47, %cst_30 [1] : vector<8x512xf32> to vector<8xf32>
      %49 = vector.shape_cast %48 : vector<8xf32> to vector<8x1xf32>
      %50 = arith.addf %46, %49 : vector<8x1xf32>
      %c0_31 = arith.constant 0 : index
      %c0_32 = arith.constant 0 : index
      %51 = vector.load %arg10[%c0_31, %c0_32] : memref<8x1xf32, #tpu.memory_space<vmem>>, vector<8x1xf32>
      tpu.vector_store %arg10[%c0_31, %c0_32], %50 {strides = array<i32>} : memref<8x1xf32, #tpu.memory_space<vmem>>, vector<8x1xf32>,
    } else {
    }
    %c0_i32_19 = arith.constant 0 : i32
    %33 = arith.cmpi eq, %arg0, %c0_i32_19 : i32
    %c0_i32_20 = arith.constant 0 : i32
    %34 = arith.cmpi eq, %arg1, %c0_i32_20 : i32
    %35 = arith.andi %33, %34 : i1
    %36 = arith.extui %35 : i1 to i32
    %c0_i32_21 = arith.constant 0 : i32
    %37 = arith.cmpi ne, %36, %c0_i32_21 : i32
    scf.if %37 {
      %c0_23 = arith.constant 0 : index
      %c0_24 = arith.constant 0 : index
      %41 = vector.load %arg9[%c0_23, %c0_24] : memref<8x1xf32, #tpu.memory_space<vmem>>, vector<8x1xf32>
      %cst_25 = arith.constant 0.001953125 : f32
      %42 = vector.broadcast %cst_25 : f32 to vector<8x1xf32>
      %43 = arith.mulf %41, %42 : vector<8x1xf32>
      %c0_26 = arith.constant 0 : index
      %c0_27 = arith.constant 0 : index
      %44 = vector.load %arg10[%c0_26, %c0_27] : memref<8x1xf32, #tpu.memory_space<vmem>>, vector<8x1xf32>
      %cst_28 = arith.constant 0.001953125 : f32
      %45 = vector.broadcast %cst_28 : f32 to vector<8x1xf32>
      %46 = arith.mulf %44, %45 : vector<8x1xf32>
      %47 = arith.mulf %43, %43 : vector<8x1xf32>
      %48 = arith.subf %46, %47 : vector<8x1xf32>
      %cst_29 = arith.constant 9.99999974E-6 : f32
      %49 = vector.broadcast %cst_29 : f32 to vector<8x1xf32>
      %50 = arith.addf %48, %49 : vector<8x1xf32>
      %51 = math.rsqrt %50 : vector<8x1xf32>
      %c0_30 = arith.constant 0 : index
      %c0_31 = arith.constant 0 : index
      %52 = vector.load %arg6[%c0_30, %c0_31] : memref<8x1xf32, #tpu.memory_space<vmem>>, vector<8x1xf32>
      %53 = arith.mulf %52, %51 : vector<8x1xf32>
      %c0_32 = arith.constant 0 : index
      %c0_33 = arith.constant 0 : index
      %54 = vector.load %arg11[%c0_32, %c0_33] : memref<8x1xf32, #tpu.memory_space<vmem>>, vector<8x1xf32>
      tpu.vector_store %arg11[%c0_32, %c0_33], %53 {strides = array<i32>} : memref<8x1xf32, #tpu.memory_space<vmem>>, vector<8x1xf32>,
      %c0_34 = arith.constant 0 : index
      %c0_35 = arith.constant 0 : index
      %55 = vector.load %arg7[%c0_34, %c0_35] : memref<8x1xf32, #tpu.memory_space<vmem>>, vector<8x1xf32>
      %56 = arith.mulf %43, %53 : vector<8x1xf32>
      %57 = arith.subf %55, %56 : vector<8x1xf32>
      %c0_36 = arith.constant 0 : index
      %c0_37 = arith.constant 0 : index
      %58 = vector.load %arg12[%c0_36, %c0_37] : memref<8x1xf32, #tpu.memory_space<vmem>>, vector<8x1xf32>
      tpu.vector_store %arg12[%c0_36, %c0_37], %57 {strides = array<i32>} : memref<8x1xf32, #tpu.memory_space<vmem>>, vector<8x1xf32>,
    } else {
    }
    %c1_i32 = arith.constant 1 : i32
    %38 = arith.cmpi eq, %arg0, %c1_i32 : i32
    %39 = arith.extui %38 : i1 to i32
    %c0_i32_22 = arith.constant 0 : i32
    %40 = arith.cmpi ne, %39, %c0_i32_22 : i32
    scf.if %40 {
      %c0_23 = arith.constant 0 : index
      %c0_24 = arith.constant 0 : index
      %41 = vector.load %arg11[%c0_23, %c0_24] : memref<8x1xf32, #tpu.memory_space<vmem>>, vector<8x1xf32>
      %42 = vector.broadcast %41 : vector<8x1xf32> to vector<8x512xf32>
      %43 = arith.mulf %24, %42 : vector<8x512xf32>
      %c0_25 = arith.constant 0 : index
      %c0_26 = arith.constant 0 : index
      %44 = vector.load %arg12[%c0_25, %c0_26] : memref<8x1xf32, #tpu.memory_space<vmem>>, vector<8x1xf32>
      %45 = vector.broadcast %44 : vector<8x1xf32> to vector<8x512xf32>
      %46 = arith.addf %43, %45 : vector<8x512xf32>
      %cst_27 = arith.constant 0.000000e+00 : f32
      %47 = vector.broadcast %cst_27 : f32 to vector<8x512xf32>
      %48 = arith.cmpf ogt, %46, %47 : vector<8x512xf32>
      %49 = math.exp %46 : vector<8x512xf32>
      %cst_28 = arith.constant 1.000000e+00 : f32
      %50 = vector.broadcast %cst_28 : f32 to vector<8x512xf32>
      %51 = arith.subf %49, %50 : vector<8x512xf32>
      %cst_29 = arith.constant 1.67326319 : f32
      %52 = vector.broadcast %cst_29 : f32 to vector<8x512xf32>
      %53 = arith.mulf %52, %51 : vector<8x512xf32>
      %54 = arith.select %48, %46, %53 : vector<8x512xi1>, vector<8x512xf32>
      %cst_30 = arith.constant 1.05070102 : f32
      %55 = vector.broadcast %cst_30 : f32 to vector<8x512xf32>
      %56 = arith.mulf %55, %54 : vector<8x512xf32>
      %c0_31 = arith.constant 0 : index
      %c0_32 = arith.constant 0 : index
      %57 = vector.load %arg8[%c0_31, %c0_32] : memref<8x512xf32, #tpu.memory_space<vmem>>, vector<8x512xf32>
      tpu.vector_store %arg8[%c0_31, %c0_32], %56 {strides = array<i32>} : memref<8x512xf32, #tpu.memory_space<vmem>>, vector<8x512xf32>,
    } else {
    }
    return
  }
  func.func @transform_0(%arg0: i32, %arg1: i32) -> (i32, i32) {
    %c0_i32 = arith.constant 0 : i32
    %c0_i32_0 = arith.constant 0 : i32
    return %c0_i32, %arg1 : i32, i32
  }
  func.func @transform_1(%arg0: i32, %arg1: i32) -> (i32, i32) {
    %c0_i32 = arith.constant 0 : i32
    %c0_i32_0 = arith.constant 0 : i32
    return %c0_i32, %arg1 : i32, i32
  }
  func.func @transform_2(%arg0: i32, %arg1: i32) -> (i32, i32, i32) {
    %c0_i32 = arith.constant 0 : i32
    %c0_i32_0 = arith.constant 0 : i32
    %c0_i32_1 = arith.constant 0 : i32
    %c0_i32_2 = arith.constant 0 : i32
    return %c0_i32, %c0_i32_0, %c0_i32_1 : i32, i32, i32
  }
  func.func @transform_3(%arg0: i32, %arg1: i32) -> (i32, i32) {
    %c0_i32 = arith.constant 0 : i32
    %c0_i32_0 = arith.constant 0 : i32
    %c0_i32_1 = arith.constant 0 : i32
    return %c0_i32, %c0_i32_0 : i32, i32
  }
  func.func @transform_4(%arg0: i32, %arg1: i32) -> (i32, i32) {
    %c0_i32 = arith.constant 0 : i32
    %c0_i32_0 = arith.constant 0 : i32
    %c0_i32_1 = arith.constant 0 : i32
    return %c0_i32, %c0_i32_0 : i32, i32
  }
  func.func @transform_5(%arg0: i32, %arg1: i32) -> (i32, i32) {
    %c0_i32 = arith.constant 0 : i32
    %c0_i32_0 = arith.constant 0 : i32
    %c0_i32_1 = arith.constant 0 : i32
    return %c0_i32, %c0_i32_0 : i32, i32
  }
  func.func @transform_6(%arg0: i32, %arg1: i32) -> (i32, i32) {
    %0 = arith.muli %arg1, %arg0 : i32
    %c0_i32 = arith.constant 0 : i32
    %c0_i32_0 = arith.constant 0 : i32
    return %c0_i32, %0 : i32, i32
  }
}

</mosaic_0001>

<llo_original>
// kernel: tpu_custom_call.1
$region0: #{tpu_custom_call.1}
  #allocation0 [shape = 'u32[]', space=smem, size = 0x4, offset = 0x4, fixed_abs, tag = 'smem constant byte address 0x4 - core index']
  #allocation1 [shape = 'u32[144,128]{1,0:T(1,128)}', space=vmem, size = 0x12000, scoped, tag = 'internal scratch']
  #allocation2 [shape = 'f32[8,1]{1,0:T(8,128)}', space=vmem, size = 0x1000, scoped, tag = 'scratch operand']
  #allocation3 [shape = 'f32[8,1]{1,0:T(8,128)}', space=vmem, size = 0x1000, scoped, tag = 'scratch operand']
  #allocation4 [shape = 'f32[8,1]{1,0:T(8,128)}', space=vmem, size = 0x1000, scoped, tag = 'scratch operand']
  #allocation5 [shape = 'f32[8,1]{1,0:T(8,128)}', space=vmem, size = 0x1000, scoped, tag = 'scratch operand']
  %s0 = inlined_call_operand.vmem [shape: f32[4,512], index: 0, kind: input, shape index: {}]
  %s1 = inlined_call_operand.vmem [shape: f32[3,512], index: 1, kind: input, shape index: {}]
  %s2 = inlined_call_operand.vmem [shape: f32[3,8,4], index: 2, kind: input, shape index: {}]
  %s3 = inlined_call_operand.vmem [shape: f32[8,3], index: 3, kind: input, shape index: {}]
  %s4 = inlined_call_operand.vmem [shape: f32[8,1], index: 4, kind: input, shape index: {}]
  %s5 = inlined_call_operand.vmem [shape: f32[8,1], index: 5, kind: input, shape index: {}]
  %s6 = inlined_call_operand.hbm [shape: f32[8,512], index: 6, kind: output, shape index: {}]
  %s7 = sld [smem:[#allocation0]]
  $region73: #{tpu_custom_call.1} parent=0
    _
  %s9 = ssub.s32 1, %s7
  %s10 = scalar_select 0, %s9, %s7
  $region1: #{tpu_custom_call.1} parent=0
    #allocation6 [shape = 'u8[32768]{0}', space=vmem, size = 0x8000, scoped, tag = 'output window, operand 0']
    #allocation7 [shape = 's32[2]{0}', space=sflag, size = 0x8, scoped, tag = 'scoped memory for tpu_custom_call.1']
    %11 = vsyncpa [#allocation7], 0
    %s12 = scalar_lea.sflag [#allocation7], 1
    %13 = vsyncpa %s12, 0
    loop: start=0, step=1, limit=4
    $region2: #{tpu_custom_call.1} parent=1 // loop_pre_header
      _
    $region3: #{tpu_custom_call.1} parent=1 // loop_header
      %s15 = sphi 0, %s19
      %p16 = scmp.ge.s32.totalorder %s15, 4
      %s22 = sphi 0, %s34
      %s23 = sphi 0, %s30
      %s24 = sphi 0, %s22
      %s25 = sphi 0, %s23
      %s26 = sphi 0, %s24
      %s27 = sphi 0, %s25
      %s37 = sphi 0, %s39
      %s40 = sphi 0, %s37
      %s41 = sphi 0, %s40
      %s57 = sphi 0, %s41
      %s63 = sphi 0, %s65
      %s66 = sphi 0, %s63
      %s67 = sphi 0, %s66
      %s83 = sphi 0, %s67
      %s87 = sphi 0, %s87
      %s89 = sphi 0, %s87
      %s90 = sphi 0, %s89
      %s104 = sphi 0, %s90
      %s108 = sphi 0, %s108
      %s110 = sphi 0, %s108
      %s111 = sphi 0, %s110
      %s125 = sphi 0, %s111
      %s129 = sphi 0, %s129
      %s131 = sphi 0, %s129
      %s132 = sphi 0, %s131
      %s146 = sphi 0, %s132
      %s150 = sphi 0, %s150
      %s152 = sphi 0, %s150
      %s153 = sphi 0, %s152
      %s167 = sphi 0, %s153
      %s175 = sphi 0, %s177
      %s178 = sphi 0, %s175
      %s179 = sphi 0, %s178
      %s195 = sphi 0, %s179
    $region4: #{tpu_custom_call.1} parent=1 // loop_header_branch
      %18 = sbr.rel (%p16) target = $region8
    $region5: #{tpu_custom_call.1} parent=1 // loop_body
      %s20 = ssub.s32 %s15, 1
      %s21 = ssub.s32 %s15, 2
      %s28 = sadd.s32 1, %s23
      %p29 = scmp.ge.s32.totalorder %s28, 1
      %s30 = scalar_select %p29, 0, %s28
      %s31 = sadd.s32 1, %s22
      %s32 = scalar_select %p29, %s31, %s22
      %p33 = scmp.ge.s32.totalorder %s32, 2
      %s34 = scalar_select %p33, 0, %s32
      %s35 = ssub.s32 %s23, %s30
      %p36 = scmp.eq.s32.totalorder %s35, 0
      %s38 = sadd.s32 %s37, 1
      %s39 = scalar_select %p36, %s37, %s38
      %p42 = pneg %p36
      %p43 = scmp.eq.s32.totalorder %s15, 1
      %p44 = por %p42, %p43
      %p45 = scmp.ne.s32.totalorder %s37, %s40
      %p46 = scmp.eq.s32.totalorder %s15, 0
      %p47 = por %p45, %p46
      %p48 = scmp.ne.s32.totalorder %s37, %s40
      %p49 = scmp.eq.s32.totalorder %s20, 1
      %p50 = por %p48, %p49
      %p51 = scmp.ne.s32.totalorder %s40, %s41
      %p52 = scmp.eq.s32.totalorder %s20, 0
      %p53 = por %p51, %p52
      %p54 = scmp.ne.s32.totalorder %s40, %s41
      %p55 = scmp.eq.s32.totalorder %s21, 1
      %p56 = por %p54, %p55
      %p58 = scmp.ne.s32.totalorder %s41, %s57
      %p59 = scmp.eq.s32.totalorder %s21, 0
      %p60 = por %p58, %p59
      %s61 = ssub.s32 %s23, %s30
      %p62 = scmp.eq.s32.totalorder %s61, 0
      %s64 = sadd.s32 %s63, 1
      %s65 = scalar_select %p62, %s63, %s64
      %p68 = pneg %p62
      %p69 = scmp.eq.s32.totalorder %s15, 1
      %p70 = por %p68, %p69
      %p71 = scmp.ne.s32.totalorder %s63, %s66
      %p72 = scmp.eq.s32.totalorder %s15, 0
      %p73 = por %p71, %p72
      %p74 = scmp.ne.s32.totalorder %s63, %s66
      %p75 = scmp.eq.s32.totalorder %s20, 1
      %p76 = por %p74, %p75
      %p77 = scmp.ne.s32.totalorder %s66, %s67
      %p78 = scmp.eq.s32.totalorder %s20, 0
      %p79 = por %p77, %p78
      %p80 = scmp.ne.s32.totalorder %s66, %s67
      %p81 = scmp.eq.s32.totalorder %s21, 1
      %p82 = por %p80, %p81
      %p84 = scmp.ne.s32.totalorder %s67, %s83
      %p85 = scmp.eq.s32.totalorder %s21, 0
      %p86 = por %p84, %p85
      %s88 = sadd.s32 %s87, 1
      %p91 = scmp.eq.s32.totalorder %s15, 1
      %p92 = scmp.ne.s32.totalorder %s87, %s89
      %p93 = scmp.eq.s32.totalorder %s15, 0
      %p94 = por %p92, %p93
      %p95 = scmp.ne.s32.totalorder %s87, %s89
      %p96 = scmp.eq.s32.totalorder %s20, 1
      %p97 = por %p95, %p96
      %p98 = scmp.ne.s32.totalorder %s89, %s90
      %p99 = scmp.eq.s32.totalorder %s20, 0
      %p100 = por %p98, %p99
      %p101 = scmp.ne.s32.totalorder %s89, %s90
      %p102 = scmp.eq.s32.totalorder %s21, 1
      %p103 = por %p101, %p102
      %p105 = scmp.ne.s32.totalorder %s90, %s104
      %p106 = scmp.eq.s32.totalorder %s21, 0
      %p107 = por %p105, %p106
      %s109 = sadd.s32 %s108, 1
      %p112 = scmp.eq.s32.totalorder %s15, 1
      %p113 = scmp.ne.s32.totalorder %s108, %s110
      %p114 = scmp.eq.s32.totalorder %s15, 0
      %p115 = por %p113, %p114
      %p116 = scmp.ne.s32.totalorder %s108, %s110
      %p117 = scmp.eq.s32.totalorder %s20, 1
      %p118 = por %p116, %p117
      %p119 = scmp.ne.s32.totalorder %s110, %s111
      %p120 = scmp.eq.s32.totalorder %s20, 0
      %p121 = por %p119, %p120
      %p122 = scmp.ne.s32.totalorder %s110, %s111
      %p123 = scmp.eq.s32.totalorder %s21, 1
      %p124 = por %p122, %p123
      %p126 = scmp.ne.s32.totalorder %s111, %s125
      %p127 = scmp.eq.s32.totalorder %s21, 0
      %p128 = por %p126, %p127
      %s130 = sadd.s32 %s129, 1
      %p133 = scmp.eq.s32.totalorder %s15, 1
      %p134 = scmp.ne.s32.totalorder %s129, %s131
      %p135 = scmp.eq.s32.totalorder %s15, 0
      %p136 = por %p134, %p135
      %p137 = scmp.ne.s32.totalorder %s129, %s131
      %p138 = scmp.eq.s32.totalorder %s20, 1
      %p139 = por %p137, %p138
      %p140 = scmp.ne.s32.totalorder %s131, %s132
      %p141 = scmp.eq.s32.totalorder %s20, 0
      %p142 = por %p140, %p141
      %p143 = scmp.ne.s32.totalorder %s131, %s132
      %p144 = scmp.eq.s32.totalorder %s21, 1
      %p145 = por %p143, %p144
      %p147 = scmp.ne.s32.totalorder %s132, %s146
      %p148 = scmp.eq.s32.totalorder %s21, 0
      %p149 = por %p147, %p148
      %s151 = sadd.s32 %s150, 1
      %p154 = scmp.eq.s32.totalorder %s15, 1
      %p155 = scmp.ne.s32.totalorder %s150, %s152
      %p156 = scmp.eq.s32.totalorder %s15, 0
      %p157 = por %p155, %p156
      %p158 = scmp.ne.s32.totalorder %s150, %s152
      %p159 = scmp.eq.s32.totalorder %s20, 1
      %p160 = por %p158, %p159
      %p161 = scmp.ne.s32.totalorder %s152, %s153
      %p162 = scmp.eq.s32.totalorder %s20, 0
      %p163 = por %p161, %p162
      %p164 = scmp.ne.s32.totalorder %s152, %s153
      %p165 = scmp.eq.s32.totalorder %s21, 1
      %p166 = por %p164, %p165
      %p168 = scmp.ne.s32.totalorder %s153, %s167
      %p169 = scmp.eq.s32.totalorder %s21, 0
      %p170 = por %p168, %p169
      %s171 = smul.u32 %s23, %s22
      %s172 = smul.u32 %s30, %s34
      %s173 = ssub.s32 %s171, %s172
      %p174 = scmp.eq.s32.totalorder %s173, 0
      %s176 = sadd.s32 %s175, 1
      %s177 = scalar_select %p174, %s175, %s176
      %p180 = pneg %p174
      %p181 = scmp.eq.s32.totalorder %s15, 1
      %p182 = por %p180, %p181
      %p183 = scmp.ne.s32.totalorder %s175, %s178
      %p184 = scmp.eq.s32.totalorder %s15, 0
      %p185 = por %p183, %p184
      %p186 = scmp.ne.s32.totalorder %s175, %s178
      %p187 = scmp.eq.s32.totalorder %s20, 1
      %p188 = por %p186, %p187
      %p189 = scmp.ne.s32.totalorder %s178, %s179
      %p190 = scmp.eq.s32.totalorder %s20, 0
      %p191 = por %p189, %p190
      %p192 = scmp.ne.s32.totalorder %s178, %s179
      %p193 = scmp.eq.s32.totalorder %s21, 1
      %p194 = por %p192, %p193
      %p196 = scmp.ne.s32.totalorder %s179, %s195
      %p197 = scmp.eq.s32.totalorder %s21, 0
      %p198 = por %p196, %p197
      %p199 = scmp.le.s32.totalorder 1, %s15
      %p200 = scmp.lt.s32.totalorder %s15, 3
      %p201 = pnand %p199, %p200
      %p202 = pneg %p201
      // Predicated region
      $region9: #{tpu_custom_call.1} parent=5 // pred_check
        _
      $region10: #{tpu_custom_call.1} parent=5 // pred_check_branch
        %204 = sbr.rel (%p201) target = $region12
      $region11: #{tpu_custom_call.1} parent=5 // pred_region
        %s205 = ssub.s32 %s15, 1
        // Predicated region
        $region13: #{tpu_custom_call.1} parent=11 // pred_check
          %p206 = pneg %p53
        $region14: #{tpu_custom_call.1} parent=11 // pred_check_branch
          %208 = sbr.rel (%p206) target = $region16
        $region15: #{tpu_custom_call.1} parent=11 // pred_region
          %s209 = smul.u32 4, %s25
          %p210 = scmp.lt.s32.totalorder %s209, 3
          %s211 = scalar_select %p210, %s209, 3
          %s212 = smul.addr %s211, 4
          %s213 = scalar_lea.vmem %s0, %s212
          %s214 = smul.u32 4, %s25
        $region16: #{tpu_custom_call.1} parent=11 // pred_fallthru
          _
        // Predicated region
        $region17: #{tpu_custom_call.1} parent=11 // pred_check
          %p215 = pneg %p79
        $region18: #{tpu_custom_call.1} parent=11 // pred_check_branch
          %217 = sbr.rel (%p215) target = $region20
        $region19: #{tpu_custom_call.1} parent=11 // pred_region
          %s218 = smul.u32 4, %s25
          %p219 = scmp.lt.s32.totalorder %s218, 3
          %s220 = scalar_select %p219, %s218, 3
          %s221 = smul.addr %s220, 4
          %s222 = scalar_lea.vmem %s1, %s221
          %s223 = smul.u32 4, %s25
        $region20: #{tpu_custom_call.1} parent=11 // pred_fallthru
          _
        // Predicated region
        $region21: #{tpu_custom_call.1} parent=11 // pred_check
          %p224 = pneg %p100
        $region22: #{tpu_custom_call.1} parent=11 // pred_check_branch
          %226 = sbr.rel (%p224) target = $region24
        $region23: #{tpu_custom_call.1} parent=11 // pred_region
          _
        $region24: #{tpu_custom_call.1} parent=11 // pred_fallthru
          _
        // Predicated region
        $region25: #{tpu_custom_call.1} parent=11 // pred_check
          %p227 = pneg %p121
        $region26: #{tpu_custom_call.1} parent=11 // pred_check_branch
          %229 = sbr.rel (%p227) target = $region28
        $region27: #{tpu_custom_call.1} parent=11 // pred_region
          _
        $region28: #{tpu_custom_call.1} parent=11 // pred_fallthru
          _
        // Predicated region
        $region29: #{tpu_custom_call.1} parent=11 // pred_check
          %p230 = pneg %p142
        $region30: #{tpu_custom_call.1} parent=11 // pred_check_branch
          %232 = sbr.rel (%p230) target = $region32
        $region31: #{tpu_custom_call.1} parent=11 // pred_region
          _
        $region32: #{tpu_custom_call.1} parent=11 // pred_fallthru
          _
        // Predicated region
        $region33: #{tpu_custom_call.1} parent=11 // pred_check
          %p233 = pneg %p163
        $region34: #{tpu_custom_call.1} parent=11 // pred_check_branch
          %235 = sbr.rel (%p233) target = $region36
        $region35: #{tpu_custom_call.1} parent=11 // pred_region
          _
        $region36: #{tpu_custom_call.1} parent=11 // pred_fallthru
          _
      $region12: #{tpu_custom_call.1} parent=5 // pred_fallthru
        _
      %p236 = scmp.lt.s32.totalorder %s15, 2
      // Predicated region
      $region37: #{tpu_custom_call.1} parent=5 // pred_check
        %p237 = pneg %p236
      $region38: #{tpu_custom_call.1} parent=5 // pred_check_branch
        %239 = sbr.rel (%p237) target = $region40
      $region39: #{tpu_custom_call.1} parent=5 // pred_region
        _
      $region40: #{tpu_custom_call.1} parent=5 // pred_fallthru
        _
      %p240 = scmp.le.s32.totalorder 1, %s15
      %p241 = scmp.lt.s32.totalorder %s15, 3
      %p242 = pnand %p240, %p241
      %p243 = pneg %p242
      // Predicated region
      $region41: #{tpu_custom_call.1} parent=5 // pred_check
        _
      $region42: #{tpu_custom_call.1} parent=5 // pred_check_branch
        %245 = sbr.rel (%p242) target = $region44
      $region43: #{tpu_custom_call.1} parent=5 // pred_region
        %s246 = ssub.s32 %s15, 1
        %s247 = smul.u32 4, %s25
        %p248 = scmp.lt.s32.totalorder %s247, 3
        %s249 = scalar_select %p248, %s247, 3
        %s250 = smul.addr %s249, 4
        %s251 = scalar_lea.vmem %s0, %s250
        %p252 = pneg %p53
        %p253 = pneg %p50
        %s254 = smul.u32 4, %s25
        %p255 = scmp.lt.s32.totalorder %s254, 3
        %s256 = scalar_select %p255, %s254, 3
        %s257 = smul.addr %s256, 4
        %s258 = scalar_lea.vmem %s1, %s257
        %p259 = pneg %p79
        %p260 = pneg %p76
        %p261 = pneg %p100
        %p262 = pneg %p97
        %p263 = pneg %p121
        %p264 = pneg %p118
        %p265 = pneg %p142
        %p266 = pneg %p139
        %p267 = pneg %p163
        %p268 = pneg %p160
        %p269 = pneg %p191
        %p270 = pneg %p188
        %s271 = sand.u32 %s178, 1
        %s272 = scalar_lea.sflag [#allocation7], %s271
        %s273 = sand.u32 %s178, 1
        %s274 = smul.addr %s273, 32
        %s275 = scalar_lea.vmem [#allocation6], %s274
        %s276 = smul.u32 4, %s25
        %p277 = scmp.lt.s32.totalorder %s276, 3
        %s278 = scalar_select %p277, %s276, 3
        %s279 = smul.addr %s278, 4
        %s280 = scalar_lea.vmem %s0, %s279
        %s281 = smul.u32 4, %s25
        %s282 = smul.u32 4, %s25
        %p283 = scmp.lt.s32.totalorder %s282, 3
        %s284 = scalar_select %p283, %s282, 3
        %s285 = smul.addr %s284, 4
        %s286 = scalar_lea.vmem %s1, %s285
        %s287 = smul.u32 4, %s25
        %s288 = smul.u32 %s25, %s24
        %s289 = smul.u32 4, %s288
        %v290 = vld [vmem:[%s280] sm:$0xff]
        %v291 = vld [vmem:[%s280 + $0x8] sm:$0xff]
        %v292 = vld [vmem:[%s286] sm:$0x77]
        %v293 = vld [vmem:[%s286 + $0x8] sm:$0x77]
        %v294 = vld [vmem:[%s3] sm:$0xff]
        %v295 = vld [vmem:[%s2] sm:$0xff]
        %v298 = vlaneseq
        %v299 = vshrl.u32 %v298, 7
        %v300 = vsub.s32 0, %v299
        %v301 = vrot.slane %v292, %v300
        %v302 = vlaneseq
        %v303 = vshrl.u32 %v302, 7
        %v304 = vsub.s32 4, %v303
        %v305 = vrot.slane %v292, %v304
        %v306 = vlaneseq
        %v307 = vshrl.u32 %v306, 7
        %v308 = vsub.s32 0, %v307
        %v309 = vrot.slane %v293, %v308
        %v310 = vlaneseq
        %v311 = vshrl.u32 %v310, 7
        %v312 = vsub.s32 4, %v311
        %v313 = vrot.slane %v293, %v312
        %v318 = vlaneseq
        %v319 = vshrl.u32 %v318, 7
        %v320 = vsub.s32 0, %v319
        %v321 = vrot.slane %v301, %v320
        %v322 = vlaneseq
        %v323 = vshrl.u32 %v322, 7
        %v324 = vsub.s32 0, %v323
        %v325 = vrot.slane %v305, %v324
        %v326 = vlaneseq
        %v327 = vshrl.u32 %v326, 7
        %v328 = vsub.s32 0, %v327
        %v329 = vrot.slane %v309, %v328
        %v330 = vlaneseq
        %v331 = vshrl.u32 %v330, 7
        %v332 = vsub.s32 0, %v331
        %v333 = vrot.slane %v313, %v332
        %v338 = vcombine.low %v321, %v325
        %v339 = vcombine.low %v329, %v333
        %v342 = vmul.f32 %v290, %v338
        %v343 = vmul.f32 %v291, %v339
        %v346 = vcombine.high %v342, %v342
        %v347 = vcombine.high %v343, %v343
        %vm348 = vcmask 31744
        %v350 = vsel %vm348, %v295, 0
        %vm352 = vcmask 1043456
        %v353 = vsel %vm352, %v342, 0
        %v355 = vsel %vm352, %v346, 0
        %v357 = vsel %vm352, %v343, 0
        %v359 = vsel %vm352, %v347, 0
        %361 = vmatprep.subr.mxu0 %v355
        %362 = vmatpush1.msra.mxu0 %v353
        %363 = vmatprep.subr.mxu0 0.0
        %364 = vmatpush1.msra.mxu0 0.0
        %365 = vmatprep.subr.mxu0 0.0
        %366 = vmatpush1.msra.mxu0 0.0
        %367 = vmatprep.subr.mxu0 0.0
        %368 = vmatpush1.msra.mxu0 0.0
        %369 = vmatprep.subr.mxu0 0.0
        %370 = vmatpush1.msra.mxu0 0.0
        %371 = vmatprep.subr.mxu0 0.0
        %372 = vmatpush1.msra.mxu0 0.0
        %373 = vmatprep.subr.mxu0 0.0
        %374 = vmatpush1.msra.mxu0 0.0
        %375 = vmatprep.subr.mxu0 0.0
        %376 = vmatpush1.msra.mxu0 0.0
        %377 = vmatprep.subr.mxu0 0.0
        %378 = vmatpush1.msra.mxu0 0.0
        %379 = vmatprep.subr.mxu0 0.0
        %380 = vmatpush1.msra.mxu0 0.0
        %381 = vmatprep.subr.mxu0 0.0
        %382 = vmatpush1.msra.mxu0 0.0
        %383 = vmatprep.subr.mxu0 0.0
        %384 = vmatpush1.msra.mxu0 0.0
        %385 = vmatprep.subr.mxu0 0.0
        %386 = vmatpush1.msra.mxu0 0.0
        %387 = vmatprep.subr.mxu0 0.0
        %388 = vmatpush1.msra.mxu0 0.0
        %389 = vmatprep.subr.mxu0 0.0
        %390 = vmatpush1.msra.mxu0 0.0
        %391 = vmatprep.subr.mxu0 0.0
        %392 = vmatpush1.msra.mxu0 0.0
        %393 = vmatprep.subr.mxu0 0.0
        %394 = vmatpush1.msra.mxu0 0.0
        %395 = vmatprep.subr.mxu0 0.0
        %396 = vmatpush1.msra.mxu0 0.0
        %397 = vmatprep.subr.mxu0 0.0
        %398 = vmatpush1.msra.mxu0 0.0
        %399 = vmatprep.subr.mxu0 0.0
        %400 = vmatpush1.msra.mxu0 0.0
        %401 = vmatprep.subr.mxu0 0.0
        %402 = vmatpush1.msra.mxu0 0.0
        %403 = vmatprep.subr.mxu0 0.0
        %404 = vmatpush1.msra.mxu0 0.0
        %405 = vmatprep.subr.mxu0 0.0
        %406 = vmatpush1.msra.mxu0 0.0
        %407 = vmatprep.subr.mxu0 0.0
        %408 = vmatpush1.msra.mxu0 0.0
        %409 = vmatprep.subr.mxu0 0.0
        %410 = vmatpush1.msra.mxu0 0.0
        %411 = vmatprep.subr.mxu0 0.0
        %412 = vmatpush1.msra.mxu0 0.0
        %413 = vmatprep.subr.mxu0 0.0
        %414 = vmatpush1.msra.mxu0 0.0
        %415 = vmatprep.subr.mxu0 0.0
        %416 = vmatpush1.msra.mxu0 0.0
        %417 = vmatprep.subr.mxu0 0.0
        %418 = vmatpush1.msra.mxu0 0.0
        %419 = vmatprep.subr.mxu0 0.0
        %420 = vmatpush1.msra.mxu0 0.0
        %421 = vmatprep.subr.mxu0 0.0
        %422 = vmatpush1.msra.mxu0 0.0
        %423 = vmatprep.subr.mxu0 0.0
        %424 = vmatpush1.msra.mxu0 0.0
        %425 = vmatprep.mubr.f32.mxu0 0.0
        %426 = vmatmul.mubr.f32.gmra.mrb[0].mxu0 %v350
        %v427 = vpop.f32.mrb[0].mxu0
        %v428 = vadd.f32 0.0, %v427
        %v429 = vpop.f32.mrb[0].mxu0
        %v430 = vadd.f32 0.0, %v429
        %431 = vdwg.mxu0
        %432 = vmatprep.subr.mxu0 %v359
        %433 = vmatpush1.msra.mxu0 %v357
        %434 = vmatprep.subr.mxu0 0.0
        %435 = vmatpush1.msra.mxu0 0.0
        %436 = vmatprep.subr.mxu0 0.0
        %437 = vmatpush1.msra.mxu0 0.0
        %438 = vmatprep.subr.mxu0 0.0
        %439 = vmatpush1.msra.mxu0 0.0
        %440 = vmatprep.subr.mxu0 0.0
        %441 = vmatpush1.msra.mxu0 0.0
        %442 = vmatprep.subr.mxu0 0.0
        %443 = vmatpush1.msra.mxu0 0.0
        %444 = vmatprep.subr.mxu0 0.0
        %445 = vmatpush1.msra.mxu0 0.0
        %446 = vmatprep.subr.mxu0 0.0
        %447 = vmatpush1.msra.mxu0 0.0
        %448 = vmatprep.subr.mxu0 0.0
        %449 = vmatpush1.msra.mxu0 0.0
        %450 = vmatprep.subr.mxu0 0.0
        %451 = vmatpush1.msra.mxu0 0.0
        %452 = vmatprep.subr.mxu0 0.0
        %453 = vmatpush1.msra.mxu0 0.0
        %454 = vmatprep.subr.mxu0 0.0
        %455 = vmatpush1.msra.mxu0 0.0
        %456 = vmatprep.subr.mxu0 0.0
        %457 = vmatpush1.msra.mxu0 0.0
        %458 = vmatprep.subr.mxu0 0.0
        %459 = vmatpush1.msra.mxu0 0.0
        %460 = vmatprep.subr.mxu0 0.0
        %461 = vmatpush1.msra.mxu0 0.0
        %462 = vmatprep.subr.mxu0 0.0
        %463 = vmatpush1.msra.mxu0 0.0
        %464 = vmatprep.subr.mxu0 0.0
        %465 = vmatpush1.msra.mxu0 0.0
        %466 = vmatprep.subr.mxu0 0.0
        %467 = vmatpush1.msra.mxu0 0.0
        %468 = vmatprep.subr.mxu0 0.0
        %469 = vmatpush1.msra.mxu0 0.0
        %470 = vmatprep.subr.mxu0 0.0
        %471 = vmatpush1.msra.mxu0 0.0
        %472 = vmatprep.subr.mxu0 0.0
        %473 = vmatpush1.msra.mxu0 0.0
        %474 = vmatprep.subr.mxu0 0.0
        %475 = vmatpush1.msra.mxu0 0.0
        %476 = vmatprep.subr.mxu0 0.0
        %477 = vmatpush1.msra.mxu0 0.0
        %478 = vmatprep.subr.mxu0 0.0
        %479 = vmatpush1.msra.mxu0 0.0
        %480 = vmatprep.subr.mxu0 0.0
        %481 = vmatpush1.msra.mxu0 0.0
        %482 = vmatprep.subr.mxu0 0.0
        %483 = vmatpush1.msra.mxu0 0.0
        %484 = vmatprep.subr.mxu0 0.0
        %485 = vmatpush1.msra.mxu0 0.0
        %486 = vmatprep.subr.mxu0 0.0
        %487 = vmatpush1.msra.mxu0 0.0
        %488 = vmatprep.subr.mxu0 0.0
        %489 = vmatpush1.msra.mxu0 0.0
        %490 = vmatprep.subr.mxu0 0.0
        %491 = vmatpush1.msra.mxu0 0.0
        %492 = vmatprep.subr.mxu0 0.0
        %493 = vmatpush1.msra.mxu0 0.0
        %494 = vmatprep.subr.mxu0 0.0
        %495 = vmatpush1.msra.mxu0 0.0
        %496 = vmatprep.mubr.f32.mxu0 0.0
        %497 = vmatmul.mubr.f32.gmra.mrb[0].mxu0 %v350
        %v498 = vpop.f32.mrb[0].mxu0
        %v499 = vadd.f32 0.0, %v498
        %v500 = vpop.f32.mrb[0].mxu0
        %v501 = vadd.f32 0.0, %v500
        %502 = vdwg.mxu0
        %v503 = vcombine.high %v292, %v292
        %v504 = vcombine.high %v293, %v293
        %vm505 = vcmask 23552
        %v507 = vsel %vm505, %v294, 0
        %vm509 = vcmask 1042432
        %v510 = vsel %vm509, %v292, 0
        %v512 = vsel %vm509, %v503, 0
        %v514 = vsel %vm509, %v293, 0
        %v516 = vsel %vm509, %v504, 0
        %518 = vmatprep.subr.mxu0 %v512
        %519 = vmatpush1.msra.mxu0 %v510
        %520 = vmatprep.subr.mxu0 0.0
        %521 = vmatpush1.msra.mxu0 0.0
        %522 = vmatprep.subr.mxu0 0.0
        %523 = vmatpush1.msra.mxu0 0.0
        %524 = vmatprep.subr.mxu0 0.0
        %525 = vmatpush1.msra.mxu0 0.0
        %526 = vmatprep.subr.mxu0 0.0
        %527 = vmatpush1.msra.mxu0 0.0
        %528 = vmatprep.subr.mxu0 0.0
        %529 = vmatpush1.msra.mxu0 0.0
        %530 = vmatprep.subr.mxu0 0.0
        %531 = vmatpush1.msra.mxu0 0.0
        %532 = vmatprep.subr.mxu0 0.0
        %533 = vmatpush1.msra.mxu0 0.0
        %534 = vmatprep.subr.mxu0 0.0
        %535 = vmatpush1.msra.mxu0 0.0
        %536 = vmatprep.subr.mxu0 0.0
        %537 = vmatpush1.msra.mxu0 0.0
        %538 = vmatprep.subr.mxu0 0.0
        %539 = vmatpush1.msra.mxu0 0.0
        %540 = vmatprep.subr.mxu0 0.0
        %541 = vmatpush1.msra.mxu0 0.0
        %542 = vmatprep.subr.mxu0 0.0
        %543 = vmatpush1.msra.mxu0 0.0
        %544 = vmatprep.subr.mxu0 0.0
        %545 = vmatpush1.msra.mxu0 0.0
        %546 = vmatprep.subr.mxu0 0.0
        %547 = vmatpush1.msra.mxu0 0.0
        %548 = vmatprep.subr.mxu0 0.0
        %549 = vmatpush1.msra.mxu0 0.0
        %550 = vmatprep.subr.mxu0 0.0
        %551 = vmatpush1.msra.mxu0 0.0
        %552 = vmatprep.subr.mxu0 0.0
        %553 = vmatpush1.msra.mxu0 0.0
        %554 = vmatprep.subr.mxu0 0.0
        %555 = vmatpush1.msra.mxu0 0.0
        %556 = vmatprep.subr.mxu0 0.0
        %557 = vmatpush1.msra.mxu0 0.0
        %558 = vmatprep.subr.mxu0 0.0
        %559 = vmatpush1.msra.mxu0 0.0
        %560 = vmatprep.subr.mxu0 0.0
        %561 = vmatpush1.msra.mxu0 0.0
        %562 = vmatprep.subr.mxu0 0.0
        %563 = vmatpush1.msra.mxu0 0.0
        %564 = vmatprep.subr.mxu0 0.0
        %565 = vmatpush1.msra.mxu0 0.0
        %566 = vmatprep.subr.mxu0 0.0
        %567 = vmatpush1.msra.mxu0 0.0
        %568 = vmatprep.subr.mxu0 0.0
        %569 = vmatpush1.msra.mxu0 0.0
        %570 = vmatprep.subr.mxu0 0.0
        %571 = vmatpush1.msra.mxu0 0.0
        %572 = vmatprep.subr.mxu0 0.0
        %573 = vmatpush1.msra.mxu0 0.0
        %574 = vmatprep.subr.mxu0 0.0
        %575 = vmatpush1.msra.mxu0 0.0
        %576 = vmatprep.subr.mxu0 0.0
        %577 = vmatpush1.msra.mxu0 0.0
        %578 = vmatprep.subr.mxu0 0.0
        %579 = vmatpush1.msra.mxu0 0.0
        %580 = vmatprep.subr.mxu0 0.0
        %581 = vmatpush1.msra.mxu0 0.0
        %582 = vmatprep.mubr.f32.mxu0 0.0
        %583 = vmatmul.mubr.f32.gmra.mrb[0].mxu0 %v507
        %v584 = vpop.f32.mrb[0].mxu0
        %v585 = vadd.f32 %v428, %v584
        %v586 = vpop.f32.mrb[0].mxu0
        %v587 = vadd.f32 %v430, %v586
        %588 = vdwg.mxu0
        %589 = vmatprep.subr.mxu0 %v516
        %590 = vmatpush1.msra.mxu0 %v514
        %591 = vmatprep.subr.mxu0 0.0
        %592 = vmatpush1.msra.mxu0 0.0
        %593 = vmatprep.subr.mxu0 0.0
        %594 = vmatpush1.msra.mxu0 0.0
        %595 = vmatprep.subr.mxu0 0.0
        %596 = vmatpush1.msra.mxu0 0.0
        %597 = vmatprep.subr.mxu0 0.0
        %598 = vmatpush1.msra.mxu0 0.0
        %599 = vmatprep.subr.mxu0 0.0
        %600 = vmatpush1.msra.mxu0 0.0
        %601 = vmatprep.subr.mxu0 0.0
        %602 = vmatpush1.msra.mxu0 0.0
        %603 = vmatprep.subr.mxu0 0.0
        %604 = vmatpush1.msra.mxu0 0.0
        %605 = vmatprep.subr.mxu0 0.0
        %606 = vmatpush1.msra.mxu0 0.0
        %607 = vmatprep.subr.mxu0 0.0
        %608 = vmatpush1.msra.mxu0 0.0
        %609 = vmatprep.subr.mxu0 0.0
        %610 = vmatpush1.msra.mxu0 0.0
        %611 = vmatprep.subr.mxu0 0.0
        %612 = vmatpush1.msra.mxu0 0.0
        %613 = vmatprep.subr.mxu0 0.0
        %614 = vmatpush1.msra.mxu0 0.0
        %615 = vmatprep.subr.mxu0 0.0
        %616 = vmatpush1.msra.mxu0 0.0
        %617 = vmatprep.subr.mxu0 0.0
        %618 = vmatpush1.msra.mxu0 0.0
        %619 = vmatprep.subr.mxu0 0.0
        %620 = vmatpush1.msra.mxu0 0.0
        %621 = vmatprep.subr.mxu0 0.0
        %622 = vmatpush1.msra.mxu0 0.0
        %623 = vmatprep.subr.mxu0 0.0
        %624 = vmatpush1.msra.mxu0 0.0
        %625 = vmatprep.subr.mxu0 0.0
        %626 = vmatpush1.msra.mxu0 0.0
        %627 = vmatprep.subr.mxu0 0.0
        %628 = vmatpush1.msra.mxu0 0.0
        %629 = vmatprep.subr.mxu0 0.0
        %630 = vmatpush1.msra.mxu0 0.0
        %631 = vmatprep.subr.mxu0 0.0
        %632 = vmatpush1.msra.mxu0 0.0
        %633 = vmatprep.subr.mxu0 0.0
        %634 = vmatpush1.msra.mxu0 0.0
        %635 = vmatprep.subr.mxu0 0.0
        %636 = vmatpush1.msra.mxu0 0.0
        %637 = vmatprep.subr.mxu0 0.0
        %638 = vmatpush1.msra.mxu0 0.0
        %639 = vmatprep.subr.mxu0 0.0
        %640 = vmatpush1.msra.mxu0 0.0
        %641 = vmatprep.subr.mxu0 0.0
        %642 = vmatpush1.msra.mxu0 0.0
        %643 = vmatprep.subr.mxu0 0.0
        %644 = vmatpush1.msra.mxu0 0.0
        %645 = vmatprep.subr.mxu0 0.0
        %646 = vmatpush1.msra.mxu0 0.0
        %647 = vmatprep.subr.mxu0 0.0
        %648 = vmatpush1.msra.mxu0 0.0
        %649 = vmatprep.subr.mxu0 0.0
        %650 = vmatpush1.msra.mxu0 0.0
        %651 = vmatprep.subr.mxu0 0.0
        %652 = vmatpush1.msra.mxu0 0.0
        %653 = vmatprep.mubr.f32.mxu0 0.0
        %654 = vmatmul.mubr.f32.gmra.mrb[0].mxu0 %v507
        %v655 = vpop.f32.mrb[0].mxu0
        %v656 = vadd.f32 %v499, %v655
        %v657 = vpop.f32.mrb[0].mxu0
        %v658 = vadd.f32 %v501, %v657
        %659 = vdwg.mxu0
        %s660 = scalar_lea.vmem %s2, 8
        %v661 = vld [vmem:[%s660] sm:$0xff]
        %v662 = vlaneseq
        %v663 = vshrl.u32 %v662, 7
        %v664 = vsub.s32 1, %v663
        %v665 = vrot.slane %v292, %v664
        %v666 = vlaneseq
        %v667 = vshrl.u32 %v666, 7
        %v668 = vsub.s32 5, %v667
        %v669 = vrot.slane %v292, %v668
        %v670 = vlaneseq
        %v671 = vshrl.u32 %v670, 7
        %v672 = vsub.s32 1, %v671
        %v673 = vrot.slane %v293, %v672
        %v674 = vlaneseq
        %v675 = vshrl.u32 %v674, 7
        %v676 = vsub.s32 5, %v675
        %v677 = vrot.slane %v293, %v676
        %v682 = vlaneseq
        %v683 = vshrl.u32 %v682, 7
        %v684 = vsub.s32 1, %v683
        %v685 = vrot.slane %v665, %v684
        %v686 = vlaneseq
        %v687 = vshrl.u32 %v686, 7
        %v688 = vsub.s32 1, %v687
        %v689 = vrot.slane %v669, %v688
        %v690 = vlaneseq
        %v691 = vshrl.u32 %v690, 7
        %v692 = vsub.s32 1, %v691
        %v693 = vrot.slane %v673, %v692
        %v694 = vlaneseq
        %v695 = vshrl.u32 %v694, 7
        %v696 = vsub.s32 1, %v695
        %v697 = vrot.slane %v677, %v696
        %v702 = vcombine.low %v685, %v689
        %v703 = vcombine.low %v693, %v697
        %v706 = vmul.f32 %v290, %v702
        %v707 = vmul.f32 %v291, %v703
        %v710 = vcombine.high %v706, %v706
        %v711 = vcombine.high %v707, %v707
        %v713 = vsel %vm348, %v661, 0
        %v715 = vsel %vm352, %v706, 0
        %v717 = vsel %vm352, %v710, 0
        %v719 = vsel %vm352, %v707, 0
        %v721 = vsel %vm352, %v711, 0
        %723 = vmatprep.subr.mxu0 %v717
        %724 = vmatpush1.msra.mxu0 %v715
        %725 = vmatprep.subr.mxu0 0.0
        %726 = vmatpush1.msra.mxu0 0.0
        %727 = vmatprep.subr.mxu0 0.0
        %728 = vmatpush1.msra.mxu0 0.0
        %729 = vmatprep.subr.mxu0 0.0
        %730 = vmatpush1.msra.mxu0 0.0
        %731 = vmatprep.subr.mxu0 0.0
        %732 = vmatpush1.msra.mxu0 0.0
        %733 = vmatprep.subr.mxu0 0.0
        %734 = vmatpush1.msra.mxu0 0.0
        %735 = vmatprep.subr.mxu0 0.0
        %736 = vmatpush1.msra.mxu0 0.0
        %737 = vmatprep.subr.mxu0 0.0
        %738 = vmatpush1.msra.mxu0 0.0
        %739 = vmatprep.subr.mxu0 0.0
        %740 = vmatpush1.msra.mxu0 0.0
        %741 = vmatprep.subr.mxu0 0.0
        %742 = vmatpush1.msra.mxu0 0.0
        %743 = vmatprep.subr.mxu0 0.0
        %744 = vmatpush1.msra.mxu0 0.0
        %745 = vmatprep.subr.mxu0 0.0
        %746 = vmatpush1.msra.mxu0 0.0
        %747 = vmatprep.subr.mxu0 0.0
        %748 = vmatpush1.msra.mxu0 0.0
        %749 = vmatprep.subr.mxu0 0.0
        %750 = vmatpush1.msra.mxu0 0.0
        %751 = vmatprep.subr.mxu0 0.0
        %752 = vmatpush1.msra.mxu0 0.0
        %753 = vmatprep.subr.mxu0 0.0
        %754 = vmatpush1.msra.mxu0 0.0
        %755 = vmatprep.subr.mxu0 0.0
        %756 = vmatpush1.msra.mxu0 0.0
        %757 = vmatprep.subr.mxu0 0.0
        %758 = vmatpush1.msra.mxu0 0.0
        %759 = vmatprep.subr.mxu0 0.0
        %760 = vmatpush1.msra.mxu0 0.0
        %761 = vmatprep.subr.mxu0 0.0
        %762 = vmatpush1.msra.mxu0 0.0
        %763 = vmatprep.subr.mxu0 0.0
        %764 = vmatpush1.msra.mxu0 0.0
        %765 = vmatprep.subr.mxu0 0.0
        %766 = vmatpush1.msra.mxu0 0.0
        %767 = vmatprep.subr.mxu0 0.0
        %768 = vmatpush1.msra.mxu0 0.0
        %769 = vmatprep.subr.mxu0 0.0
        %770 = vmatpush1.msra.mxu0 0.0
        %771 = vmatprep.subr.mxu0 0.0
        %772 = vmatpush1.msra.mxu0 0.0
        %773 = vmatprep.subr.mxu0 0.0
        %774 = vmatpush1.msra.mxu0 0.0
        %775 = vmatprep.subr.mxu0 0.0
        %776 = vmatpush1.msra.mxu0 0.0
        %777 = vmatprep.subr.mxu0 0.0
        %778 = vmatpush1.msra.mxu0 0.0
        %779 = vmatprep.subr.mxu0 0.0
        %780 = vmatpush1.msra.mxu0 0.0
        %781 = vmatprep.subr.mxu0 0.0
        %782 = vmatpush1.msra.mxu0 0.0
        %783 = vmatprep.subr.mxu0 0.0
        %784 = vmatpush1.msra.mxu0 0.0
        %785 = vmatprep.subr.mxu0 0.0
        %786 = vmatpush1.msra.mxu0 0.0
        %787 = vmatprep.mubr.f32.mxu0 0.0
        %788 = vmatmul.mubr.f32.gmra.mrb[0].mxu0 %v713
        %v789 = vpop.f32.mrb[0].mxu0
        %v790 = vadd.f32 0.0, %v789
        %v791 = vpop.f32.mrb[0].mxu0
        %v792 = vadd.f32 0.0, %v791
        %793 = vdwg.mxu0
        %794 = vmatprep.subr.mxu0 %v721
        %795 = vmatpush1.msra.mxu0 %v719
        %796 = vmatprep.subr.mxu0 0.0
        %797 = vmatpush1.msra.mxu0 0.0
        %798 = vmatprep.subr.mxu0 0.0
        %799 = vmatpush1.msra.mxu0 0.0
        %800 = vmatprep.subr.mxu0 0.0
        %801 = vmatpush1.msra.mxu0 0.0
        %802 = vmatprep.subr.mxu0 0.0
        %803 = vmatpush1.msra.mxu0 0.0
        %804 = vmatprep.subr.mxu0 0.0
        %805 = vmatpush1.msra.mxu0 0.0
        %806 = vmatprep.subr.mxu0 0.0
        %807 = vmatpush1.msra.mxu0 0.0
        %808 = vmatprep.subr.mxu0 0.0
        %809 = vmatpush1.msra.mxu0 0.0
        %810 = vmatprep.subr.mxu0 0.0
        %811 = vmatpush1.msra.mxu0 0.0
        %812 = vmatprep.subr.mxu0 0.0
        %813 = vmatpush1.msra.mxu0 0.0
        %814 = vmatprep.subr.mxu0 0.0
        %815 = vmatpush1.msra.mxu0 0.0
        %816 = vmatprep.subr.mxu0 0.0
        %817 = vmatpush1.msra.mxu0 0.0
        %818 = vmatprep.subr.mxu0 0.0
        %819 = vmatpush1.msra.mxu0 0.0
        %820 = vmatprep.subr.mxu0 0.0
        %821 = vmatpush1.msra.mxu0 0.0
        %822 = vmatprep.subr.mxu0 0.0
        %823 = vmatpush1.msra.mxu0 0.0
        %824 = vmatprep.subr.mxu0 0.0
        %825 = vmatpush1.msra.mxu0 0.0
        %826 = vmatprep.subr.mxu0 0.0
        %827 = vmatpush1.msra.mxu0 0.0
        %828 = vmatprep.subr.mxu0 0.0
        %829 = vmatpush1.msra.mxu0 0.0
        %830 = vmatprep.subr.mxu0 0.0
        %831 = vmatpush1.msra.mxu0 0.0
        %832 = vmatprep.subr.mxu0 0.0
        %833 = vmatpush1.msra.mxu0 0.0
        %834 = vmatprep.subr.mxu0 0.0
        %835 = vmatpush1.msra.mxu0 0.0
        %836 = vmatprep.subr.mxu0 0.0
        %837 = vmatpush1.msra.mxu0 0.0
        %838 = vmatprep.subr.mxu0 0.0
        %839 = vmatpush1.msra.mxu0 0.0
        %840 = vmatprep.subr.mxu0 0.0
        %841 = vmatpush1.msra.mxu0 0.0
        %842 = vmatprep.subr.mxu0 0.0
        %843 = vmatpush1.msra.mxu0 0.0
        %844 = vmatprep.subr.mxu0 0.0
        %845 = vmatpush1.msra.mxu0 0.0
        %846 = vmatprep.subr.mxu0 0.0
        %847 = vmatpush1.msra.mxu0 0.0
        %848 = vmatprep.subr.mxu0 0.0
        %849 = vmatpush1.msra.mxu0 0.0
        %850 = vmatprep.subr.mxu0 0.0
        %851 = vmatpush1.msra.mxu0 0.0
        %852 = vmatprep.subr.mxu0 0.0
        %853 = vmatpush1.msra.mxu0 0.0
        %854 = vmatprep.subr.mxu0 0.0
        %855 = vmatpush1.msra.mxu0 0.0
        %856 = vmatprep.subr.mxu0 0.0
        %857 = vmatpush1.msra.mxu0 0.0
        %858 = vmatprep.mubr.f32.mxu0 0.0
        %859 = vmatmul.mubr.f32.gmra.mrb[0].mxu0 %v713
        %v860 = vpop.f32.mrb[0].mxu0
        %v861 = vadd.f32 0.0, %v860
        %v862 = vpop.f32.mrb[0].mxu0
        %v863 = vadd.f32 0.0, %v862
        %864 = vdwg.mxu0
        %v865 = vadd.f32 %v585, %v790
        %v866 = vadd.f32 %v587, %v792
        %v867 = vadd.f32 %v656, %v861
        %v868 = vadd.f32 %v658, %v863
        %s869 = scalar_lea.vmem %s2, 16
        %v870 = vld [vmem:[%s869] sm:$0xff]
        %v871 = vlaneseq
        %v872 = vshrl.u32 %v871, 7
        %v873 = vsub.s32 2, %v872
        %v874 = vrot.slane %v292, %v873
        %v875 = vlaneseq
        %v876 = vshrl.u32 %v875, 7
        %v877 = vsub.s32 6, %v876
        %v878 = vrot.slane %v292, %v877
        %v879 = vlaneseq
        %v880 = vshrl.u32 %v879, 7
        %v881 = vsub.s32 2, %v880
        %v882 = vrot.slane %v293, %v881
        %v883 = vlaneseq
        %v884 = vshrl.u32 %v883, 7
        %v885 = vsub.s32 6, %v884
        %v886 = vrot.slane %v293, %v885
        %v891 = vlaneseq
        %v892 = vshrl.u32 %v891, 7
        %v893 = vsub.s32 2, %v892
        %v894 = vrot.slane %v874, %v893
        %v895 = vlaneseq
        %v896 = vshrl.u32 %v895, 7
        %v897 = vsub.s32 2, %v896
        %v898 = vrot.slane %v878, %v897
        %v899 = vlaneseq
        %v900 = vshrl.u32 %v899, 7
        %v901 = vsub.s32 2, %v900
        %v902 = vrot.slane %v882, %v901
        %v903 = vlaneseq
        %v904 = vshrl.u32 %v903, 7
        %v905 = vsub.s32 2, %v904
        %v906 = vrot.slane %v886, %v905
        %v911 = vcombine.low %v894, %v898
        %v912 = vcombine.low %v902, %v906
        %v915 = vmul.f32 %v290, %v911
        %v916 = vmul.f32 %v291, %v912
        %v919 = vcombine.high %v915, %v915
        %v920 = vcombine.high %v916, %v916
        %v922 = vsel %vm348, %v870, 0
        %v924 = vsel %vm352, %v915, 0
        %v926 = vsel %vm352, %v919, 0
        %v928 = vsel %vm352, %v916, 0
        %v930 = vsel %vm352, %v920, 0
        %932 = vmatprep.subr.mxu0 %v926
        %933 = vmatpush1.msra.mxu0 %v924
        %934 = vmatprep.subr.mxu0 0.0
        %935 = vmatpush1.msra.mxu0 0.0
        %936 = vmatprep.subr.mxu0 0.0
        %937 = vmatpush1.msra.mxu0 0.0
        %938 = vmatprep.subr.mxu0 0.0
        %939 = vmatpush1.msra.mxu0 0.0
        %940 = vmatprep.subr.mxu0 0.0
        %941 = vmatpush1.msra.mxu0 0.0
        %942 = vmatprep.subr.mxu0 0.0
        %943 = vmatpush1.msra.mxu0 0.0
        %944 = vmatprep.subr.mxu0 0.0
        %945 = vmatpush1.msra.mxu0 0.0
        %946 = vmatprep.subr.mxu0 0.0
        %947 = vmatpush1.msra.mxu0 0.0
        %948 = vmatprep.subr.mxu0 0.0
        %949 = vmatpush1.msra.mxu0 0.0
        %950 = vmatprep.subr.mxu0 0.0
        %951 = vmatpush1.msra.mxu0 0.0
        %952 = vmatprep.subr.mxu0 0.0
        %953 = vmatpush1.msra.mxu0 0.0
        %954 = vmatprep.subr.mxu0 0.0
        %955 = vmatpush1.msra.mxu0 0.0
        %956 = vmatprep.subr.mxu0 0.0
        %957 = vmatpush1.msra.mxu0 0.0
        %958 = vmatprep.subr.mxu0 0.0
        %959 = vmatpush1.msra.mxu0 0.0
        %960 = vmatprep.subr.mxu0 0.0
        %961 = vmatpush1.msra.mxu0 0.0
        %962 = vmatprep.subr.mxu0 0.0
        %963 = vmatpush1.msra.mxu0 0.0
        %964 = vmatprep.subr.mxu0 0.0
        %965 = vmatpush1.msra.mxu0 0.0
        %966 = vmatprep.subr.mxu0 0.0
        %967 = vmatpush1.msra.mxu0 0.0
        %968 = vmatprep.subr.mxu0 0.0
        %969 = vmatpush1.msra.mxu0 0.0
        %970 = vmatprep.subr.mxu0 0.0
        %971 = vmatpush1.msra.mxu0 0.0
        %972 = vmatprep.subr.mxu0 0.0
        %973 = vmatpush1.msra.mxu0 0.0
        %974 = vmatprep.subr.mxu0 0.0
        %975 = vmatpush1.msra.mxu0 0.0
        %976 = vmatprep.subr.mxu0 0.0
        %977 = vmatpush1.msra.mxu0 0.0
        %978 = vmatprep.subr.mxu0 0.0
        %979 = vmatpush1.msra.mxu0 0.0
        %980 = vmatprep.subr.mxu0 0.0
        %981 = vmatpush1.msra.mxu0 0.0
        %982 = vmatprep.subr.mxu0 0.0
        %983 = vmatpush1.msra.mxu0 0.0
        %984 = vmatprep.subr.mxu0 0.0
        %985 = vmatpush1.msra.mxu0 0.0
        %986 = vmatprep.subr.mxu0 0.0
        %987 = vmatpush1.msra.mxu0 0.0
        %988 = vmatprep.subr.mxu0 0.0
        %989 = vmatpush1.msra.mxu0 0.0
        %990 = vmatprep.subr.mxu0 0.0
        %991 = vmatpush1.msra.mxu0 0.0
        %992 = vmatprep.subr.mxu0 0.0
        %993 = vmatpush1.msra.mxu0 0.0
        %994 = vmatprep.subr.mxu0 0.0
        %995 = vmatpush1.msra.mxu0 0.0
        %996 = vmatprep.mubr.f32.mxu0 0.0
        %997 = vmatmul.mubr.f32.gmra.mrb[0].mxu0 %v922
        %v998 = vpop.f32.mrb[0].mxu0
        %v999 = vadd.f32 0.0, %v998
        %v1000 = vpop.f32.mrb[0].mxu0
        %v1001 = vadd.f32 0.0, %v1000
        %1002 = vdwg.mxu0
        %1003 = vmatprep.subr.mxu0 %v930
        %1004 = vmatpush1.msra.mxu0 %v928
        %1005 = vmatprep.subr.mxu0 0.0
        %1006 = vmatpush1.msra.mxu0 0.0
        %1007 = vmatprep.subr.mxu0 0.0
        %1008 = vmatpush1.msra.mxu0 0.0
        %1009 = vmatprep.subr.mxu0 0.0
        %1010 = vmatpush1.msra.mxu0 0.0
        %1011 = vmatprep.subr.mxu0 0.0
        %1012 = vmatpush1.msra.mxu0 0.0
        %1013 = vmatprep.subr.mxu0 0.0
        %1014 = vmatpush1.msra.mxu0 0.0
        %1015 = vmatprep.subr.mxu0 0.0
        %1016 = vmatpush1.msra.mxu0 0.0
        %1017 = vmatprep.subr.mxu0 0.0
        %1018 = vmatpush1.msra.mxu0 0.0
        %1019 = vmatprep.subr.mxu0 0.0
        %1020 = vmatpush1.msra.mxu0 0.0
        %1021 = vmatprep.subr.mxu0 0.0
        %1022 = vmatpush1.msra.mxu0 0.0
        %1023 = vmatprep.subr.mxu0 0.0
        %1024 = vmatpush1.msra.mxu0 0.0
        %1025 = vmatprep.subr.mxu0 0.0
        %1026 = vmatpush1.msra.mxu0 0.0
        %1027 = vmatprep.subr.mxu0 0.0
        %1028 = vmatpush1.msra.mxu0 0.0
        %1029 = vmatprep.subr.mxu0 0.0
        %1030 = vmatpush1.msra.mxu0 0.0
        %1031 = vmatprep.subr.mxu0 0.0
        %1032 = vmatpush1.msra.mxu0 0.0
        %1033 = vmatprep.subr.mxu0 0.0
        %1034 = vmatpush1.msra.mxu0 0.0
        %1035 = vmatprep.subr.mxu0 0.0
        %1036 = vmatpush1.msra.mxu0 0.0
        %1037 = vmatprep.subr.mxu0 0.0
        %1038 = vmatpush1.msra.mxu0 0.0
        %1039 = vmatprep.subr.mxu0 0.0
        %1040 = vmatpush1.msra.mxu0 0.0
        %1041 = vmatprep.subr.mxu0 0.0
        %1042 = vmatpush1.msra.mxu0 0.0
        %1043 = vmatprep.subr.mxu0 0.0
        %1044 = vmatpush1.msra.mxu0 0.0
        %1045 = vmatprep.subr.mxu0 0.0
        %1046 = vmatpush1.msra.mxu0 0.0
        %1047 = vmatprep.subr.mxu0 0.0
        %1048 = vmatpush1.msra.mxu0 0.0
        %1049 = vmatprep.subr.mxu0 0.0
        %1050 = vmatpush1.msra.mxu0 0.0
        %1051 = vmatprep.subr.mxu0 0.0
        %1052 = vmatpush1.msra.mxu0 0.0
        %1053 = vmatprep.subr.mxu0 0.0
        %1054 = vmatpush1.msra.mxu0 0.0
        %1055 = vmatprep.subr.mxu0 0.0
        %1056 = vmatpush1.msra.mxu0 0.0
        %1057 = vmatprep.subr.mxu0 0.0
        %1058 = vmatpush1.msra.mxu0 0.0
        %1059 = vmatprep.subr.mxu0 0.0
        %1060 = vmatpush1.msra.mxu0 0.0
        %1061 = vmatprep.subr.mxu0 0.0
        %1062 = vmatpush1.msra.mxu0 0.0
        %1063 = vmatprep.subr.mxu0 0.0
        %1064 = vmatpush1.msra.mxu0 0.0
        %1065 = vmatprep.subr.mxu0 0.0
        %1066 = vmatpush1.msra.mxu0 0.0
        %1067 = vmatprep.mubr.f32.mxu0 0.0
        %1068 = vmatmul.mubr.f32.gmra.mrb[0].mxu0 %v922
        %v1069 = vpop.f32.mrb[0].mxu0
        %v1070 = vadd.f32 0.0, %v1069
        %v1071 = vpop.f32.mrb[0].mxu0
        %v1072 = vadd.f32 0.0, %v1071
        %1073 = vdwg.mxu0
        %v1074 = vadd.f32 %v865, %v999
        %v1075 = vadd.f32 %v866, %v1001
        %v1076 = vadd.f32 %v867, %v1070
        %v1077 = vadd.f32 %v868, %v1072
        %p1078 = scmp.eq.s32.totalorder %s24, 0
        %p1079 = scmp.eq.s32.totalorder %s25, 0
        %p1080 = pnand %p1078, %p1079
        %p1081 = pneg %p1080
        // Predicated region
        $region45: #{tpu_custom_call.1} parent=43 // pred_check
          _
        $region46: #{tpu_custom_call.1} parent=43 // pred_check_branch
          %1083 = sbr.rel (%p1080) target = $region48
        $region47: #{tpu_custom_call.1} parent=43 // pred_region
          %vm1084 = vcmask 7168
          %1085 = vst.msk [vmem:[#allocation2] sm:$0xff] %vm1084, 0.0
          %1086 = vst.msk [vmem:[#allocation3] sm:$0xff] %vm1084, 0.0
        $region48: #{tpu_custom_call.1} parent=43 // pred_fallthru
          _
        // Predicated region
        $region49: #{tpu_custom_call.1} parent=43 // pred_check
          %p1087 = pneg %p1078
        $region50: #{tpu_custom_call.1} parent=43 // pred_check_branch
          %1089 = sbr.rel (%p1087) target = $region52
        $region51: #{tpu_custom_call.1} parent=43 // pred_region
          %v1090 = vld [vmem:[#allocation2] sm:$0xff]
          %v1091 = vadd.f32 %v1074, %v1075
          %v1092 = vadd.f32 %v1091, %v1076
          %v1093 = vadd.f32 %v1092, %v1077
          %1094 = vadd.xlane.f32.xlu0 %v1093
          %v1095 = vpop.xlane.xlu0 %1094
          %v1096 = vadd.f32 %v1090, %v1095
          %vm1097 = vcmask 7168
          %1098 = vst.msk [vmem:[#allocation2] sm:$0xff] %vm1097, %v1096
          %v1099 = vld [vmem:[#allocation3] sm:$0xff]
          %v1100 = vmul.f32 %v1074, %v1074
          %v1101 = vmul.f32 %v1075, %v1075
          %v1102 = vmul.f32 %v1076, %v1076
          %v1103 = vmul.f32 %v1077, %v1077
          %v1104 = vadd.f32 %v1100, %v1101
          %v1105 = vadd.f32 %v1104, %v1102
          %v1106 = vadd.f32 %v1105, %v1103
          %1107 = vadd.xlane.f32.xlu0 %v1106
          %v1108 = vpop.xlane.xlu0 %1107
          %v1109 = vadd.f32 %v1099, %v1108
          %1110 = vst.msk [vmem:[#allocation3] sm:$0xff] %vm1097, %v1109
        $region52: #{tpu_custom_call.1} parent=43 // pred_fallthru
          _
        // Predicated region
        $region53: #{tpu_custom_call.1} parent=43 // pred_check
          _
        $region54: #{tpu_custom_call.1} parent=43 // pred_check_branch
          %1112 = sbr.rel (%p1080) target = $region56
        $region55: #{tpu_custom_call.1} parent=43 // pred_region
          %v1113 = vld [vmem:[#allocation2] sm:$0xff]
          %v1114 = vmul.f32 %v1113, 0.001953125
          %v1115 = vld [vmem:[#allocation3] sm:$0xff]
          %v1116 = vmul.f32 %v1115, 0.001953125
          %v1117 = vmul.f32 %v1114, %v1114
          %v1118 = vsub.f32 %v1116, %v1117
          %v1119 = vadd.f32 %v1118, 1e-05
          %v1120 = vrsqrt.pop %v1119
          %v1121 = vld [vmem:[%s4] sm:$0xff]
          %v1122 = vmul.f32 %v1121, %v1120
          %vm1123 = vcmask 7168
          %1124 = vst.msk [vmem:[#allocation4] sm:$0xff] %vm1123, %v1122
          %v1125 = vld [vmem:[%s5] sm:$0xff]
          %v1126 = vmul.f32 %v1114, %v1122
          %v1127 = vsub.f32 %v1125, %v1126
          %1128 = vst.msk [vmem:[#allocation5] sm:$0xff] %vm1123, %v1127
        $region56: #{tpu_custom_call.1} parent=43 // pred_fallthru
          _
        %p1129 = scmp.eq.s32.totalorder %s24, 1
        // Predicated region
        $region57: #{tpu_custom_call.1} parent=43 // pred_check
          %p1130 = pneg %p1129
        $region58: #{tpu_custom_call.1} parent=43 // pred_check_branch
          %1132 = sbr.rel (%p1130) target = $region60
        $region59: #{tpu_custom_call.1} parent=43 // pred_region
          %v1133 = vld [vmem:[#allocation4] sm:$0xff]
          %1135 = vset.pattern.permute.xlu0 0
          %1136 = vperm.xlu0 %1135, %v1133
          %v1137 = vpop.permute.xlu0 %1136
          %v1139 = vmul.f32 %v1074, %v1137
          %v1140 = vmul.f32 %v1075, %v1137
          %v1141 = vmul.f32 %v1076, %v1137
          %v1142 = vmul.f32 %v1077, %v1137
          %v1143 = vld [vmem:[#allocation5] sm:$0xff]
          %1145 = vset.pattern.permute.xlu0 0
          %1146 = vperm.xlu0 %1145, %v1143
          %v1147 = vpop.permute.xlu0 %1146
          %v1149 = vadd.f32 %v1139, %v1147
          %v1150 = vadd.f32 %v1140, %v1147
          %v1151 = vadd.f32 %v1141, %v1147
          %v1152 = vadd.f32 %v1142, %v1147
          %vm1153 = vcmp.gt.f32.partialorder %v1149, 0.0
          %vm1154 = vcmp.gt.f32.partialorder %v1150, 0.0
          %vm1155 = vcmp.gt.f32.partialorder %v1151, 0.0
          %vm1156 = vcmp.gt.f32.partialorder %v1152, 0.0
          %v1157 = vmul.f32 %v1149, 1.442695
          %v1158 = vpow.pop %v1157
          %v1159 = vmul.f32 %v1150, 1.442695
          %v1160 = vpow.pop %v1159
          %v1161 = vmul.f32 %v1151, 1.442695
          %v1162 = vpow.pop %v1161
          %v1163 = vmul.f32 %v1152, 1.442695
          %v1164 = vpow.pop %v1163
          %v1165 = vsub.f32 %v1158, 1.0
          %v1166 = vsub.f32 %v1160, 1.0
          %v1167 = vsub.f32 %v1162, 1.0
          %v1168 = vsub.f32 %v1164, 1.0
          %v1169 = vmul.f32 %v1165, 1.6732632
          %v1170 = vmul.f32 %v1166, 1.6732632
          %v1171 = vmul.f32 %v1167, 1.6732632
          %v1172 = vmul.f32 %v1168, 1.6732632
          %v1173 = vsel %vm1153, %v1149, %v1169
          %v1174 = vsel %vm1154, %v1150, %v1170
          %v1175 = vsel %vm1155, %v1151, %v1171
          %v1176 = vsel %vm1156, %v1152, %v1172
          %v1177 = vmul.f32 %v1173, 1.050701
          %v1178 = vmul.f32 %v1174, 1.050701
          %v1179 = vmul.f32 %v1175, 1.050701
          %v1180 = vmul.f32 %v1176, 1.050701
          %1181 = vst [vmem:[%s275] sm:$0xff] %v1177
          %1182 = vst [vmem:[%s275 + $0x8] sm:$0xff] %v1178
          %1183 = vst [vmem:[%s275 + $0x10] sm:$0xff] %v1179
          %1184 = vst [vmem:[%s275 + $0x18] sm:$0xff] %v1180
        $region60: #{tpu_custom_call.1} parent=43 // pred_fallthru
          _
        %s1185 = sand.u32 %s178, 1
        %s1186 = scalar_lea.sflag [#allocation7], %s1185
        %s1187 = sand.u32 %s178, 1
        %s1188 = smul.addr %s1187, 32
        %s1189 = scalar_lea.vmem [#allocation6], %s1188
        // Predicated region
        $region61: #{tpu_custom_call.1} parent=43 // pred_check
          %p1190 = pneg %p188
        $region62: #{tpu_custom_call.1} parent=43 // pred_check_branch
          %1192 = sbr.rel (%p1190) target = $region64
        $region63: #{tpu_custom_call.1} parent=43 // pred_region
          %s1193 = smul.u32 %s25, %s24
          %s1194 = smul.u32 4, %s1193
          %s1196 = ssub.s32 512, 512
          %1197 = vsyncadd %s1186, %s1196
          %s1198 = smul.addr %s1194, 128
          %s1199 = scalar_lea.hbm %s6, %s1198
          %s1201 = sshll.u32 %s1189, 4
          %s1202 = int_to_ptr.vmem [resolvable:$true] %s1201
          %1204 = dma.vmem_to_hbm [thread:$0]  %s1202, 512, %s1199, %s1186
        $region64: #{tpu_custom_call.1} parent=43 // pred_fallthru
          _
      $region44: #{tpu_custom_call.1} parent=5 // pred_fallthru
        _
      %p1205 = scmp.le.s32.totalorder 2, %s15
      // Predicated region
      $region65: #{tpu_custom_call.1} parent=5 // pred_check
        %p1206 = pneg %p1205
      $region66: #{tpu_custom_call.1} parent=5 // pred_check_branch
        %1208 = sbr.rel (%p1206) target = $region68
      $region67: #{tpu_custom_call.1} parent=5 // pred_region
        %s1209 = ssub.s32 %s15, 2
        // Predicated region
        $region69: #{tpu_custom_call.1} parent=67 // pred_check
          %p1210 = pneg %p194
        $region70: #{tpu_custom_call.1} parent=67 // pred_check_branch
          %1212 = sbr.rel (%p1210) target = $region72
        $region71: #{tpu_custom_call.1} parent=67 // pred_region
          %s1213 = sand.u32 %s179, 1
          %s1214 = scalar_lea.sflag [#allocation7], %s1213
          %s1215 = sand.u32 %s179, 1
          %s1216 = smul.addr %s1215, 32
          %s1217 = scalar_lea.vmem [#allocation6], %s1216
          %1218 = dma.done %s1214, 512
        $region72: #{tpu_custom_call.1} parent=67 // pred_fallthru
          _
      $region68: #{tpu_custom_call.1} parent=5 // pred_fallthru
        _
    $region6: #{tpu_custom_call.1} parent=1 // loop_footer
      %s19 = sadd.s32 1, %s15
    $region7: #{tpu_custom_call.1} parent=1 // loop_footer_branch
      %14 = sbr.rel target = $region3
    $region8: #{tpu_custom_call.1} parent=1 // loop_exit
      _
    %1219 = vsyncpa [#allocation7], 1
    %s1220 = scalar_lea.sflag [#allocation7], 1
    %1221 = vsyncpa %s1220, 1

</llo_original>
